<compile_context>
chip_gen: v7x
topology: tpu7x:2x2x1
jax: 0.10.0
libtpu: 0.0.40
codegen_flags: <defaults>
</compile_context>

<pallas_src>
import jax
import jax.numpy as jnp
from jax.experimental import pallas as pl
from jax.experimental.pallas import tpu as pltpu

_LANE = 128


def _round_up(n: int, m: int) -> int:
    return ((n + m - 1) // m) * m


def _generator_kernel(x_ref,
                      w1_ref, b1_ref,
                      w2_ref, b2_ref,
                      w3_ref, b3_ref,
                      o_ref):
    x = x_ref[...]                       # (TB, 2)
    w1 = w1_ref[...]                     # (2, 128)

    # Layer 1: K=2 is a degenerate MXU shape -> VPU outer product instead.
    h1 = x[:, 0:1] * w1[0:1, :] + x[:, 1:2] * w1[1:2, :] + b1_ref[...]
    h1 = jnp.maximum(h1, 0.0)            # (TB, 128); cols >= 16 are exactly 0

    # Layer 2: well-shaped MXU matmul with f32 accumulation.
    h2 = jnp.dot(h1, w2_ref[...], preferred_element_type=jnp.float32) + b2_ref[...]
    h2 = jnp.maximum(h2, 0.0)            # (TB, 128); cols >= 32 are exactly 0

    # Layer 3: lane-dense (TB, 128) output slab; only cols 0..1 are meaningful.
    o_ref[...] = jnp.dot(h2, w3_ref[...],
                         preferred_element_type=jnp.float32) + b3_ref[...]


def _pad2d(a, rows, cols):
    r, c = a.shape
    return jnp.pad(a, ((0, rows - r), (0, cols - c)))


def generator_forward(x, params):
    """x: (B, 2) f32; params: dict of (in,out)-layout weights and (1,out) biases."""
    B = x.shape[0]

    # Batch tile: multiple of 8 sublanes, capped at 512 rows per grid step
    # (keeps the double-buffered x/out tiles well under scoped VMEM on v7x).
    TB = min(512, _round_up(max(B, 1), 8))
    B_pad = _round_up(B, TB)
    nb = B_pad // TB

    x_pad = _pad2d(x.astype(jnp.float32), B_pad, 2)

    # Zero-pad every feature dim to the 128-lane width.
    w1 = _pad2d(params["w1"], 2, _LANE)          # (2, 128)
    b1 = _pad2d(params["b1"], 1, _LANE)          # (1, 128)
    w2 = _pad2d(params["w2"], _LANE, _LANE)      # (128, 128)
    b2 = _pad2d(params["b2"], 1, _LANE)          # (1, 128)
    w3 = _pad2d(params["w3"], _LANE, _LANE)      # (128, 128)
    b3 = _pad2d(params["b3"], 1, _LANE)          # (1, 128)

    const = lambda a: pl.BlockSpec(a.shape, lambda i: (0, 0))

    out_pad = pl.pallas_call(
        _generator_kernel,
        out_shape=jax.ShapeDtypeStruct((B_pad, _LANE), jnp.float32),
        grid=(nb,),
        in_specs=[pl.BlockSpec((TB, 2), lambda i: (i, 0)),
                  const(w1), const(b1),
                  const(w2), const(b2),
                  const(w3), const(b3)],
        out_specs=pl.BlockSpec((TB, _LANE), lambda i: (i, 0)),
        compiler_params=pltpu.CompilerParams(
            dimension_semantics=("parallel",),
            vmem_limit_bytes=32 * 1024 * 1024),
    )(x_pad, w1, b1, w2, b2, w3, b3)

    return out_pad[:B, :2]


def init_params(key):
    """Deterministic init matching PyTorch Linear shapes.

    PyTorch stores weight as (out, in); we keep the transposed (in, out) layout
    so the kernel computes x @ W directly. Init mimics Kaiming-uniform bounds.
    """
    dims = [(2, 16), (16, 32), (32, 2)]
    params = {}
    for i, (fan_in, fan_out) in enumerate(dims, start=1):
        key, kw, kb = jax.random.split(key, 3)
        bound = 1.0 / jnp.sqrt(jnp.asarray(fan_in, jnp.float32))
        params[f"w{i}"] = jax.random.uniform(
            kw, (fan_in, fan_out), jnp.float32, -bound, bound)
        params[f"b{i}"] = jax.random.uniform(
            kb, (1, fan_out), jnp.float32, -bound, bound)
    return params


if __name__ == "__main__":
    key = jax.random.PRNGKey(0)
    key, kx = jax.random.split(key)

    B = 8                                             # small batch
    x = jax.random.normal(kx, (B, 2), jnp.float32)    # 2-D latent points

    params = init_params(key)

    out = generator_forward(x, params)
    out = jax.block_until_ready(out)

    assert out.shape == (B, 2)

    # cross-check against plain-JAX reference
    def ref(x, p):
        h = jnp.maximum(x @ p["w1"] + p["b1"], 0.0)
        h = jnp.maximum(h @ p["w2"] + p["b2"], 0.0)
        return h @ p["w3"] + p["b3"]

    r = ref(x, params)
    assert bool(jnp.allclose(out, r, atol=1e-5, rtol=1e-5))

    print("KERNEL_OK")
</pallas_src>

<mosaic_0001>
module attributes {stable_mosaic.version = 11 : i64} {
  func.func @_generator_kernel(%arg0: i32, %arg1: memref<8x2xf32, #tpu.memory_space<vmem>>, %arg2: memref<2x128xf32, #tpu.memory_space<vmem>>, %arg3: memref<1x128xf32, #tpu.memory_space<vmem>>, %arg4: memref<128x128xf32, #tpu.memory_space<vmem>>, %arg5: memref<1x128xf32, #tpu.memory_space<vmem>>, %arg6: memref<128x128xf32, #tpu.memory_space<vmem>>, %arg7: memref<1x128xf32, #tpu.memory_space<vmem>>, %arg8: memref<8x128xf32, #tpu.memory_space<vmem>>) attributes {dimension_semantics = [#tpu.dimension_semantics<parallel>], iteration_bounds = array<i64: 1>, scalar_prefetch = 0 : i64, scratch_operands = 0 : i64, tpu.core_type = #tpu.core_type<tc>, window_params = [{transform_indices = @transform_0, window_bounds = array<i64: 8, 2>}, {pipeline_mode = #tpu.pipeline_mode<synchronous>, transform_indices = @transform_1, window_bounds = array<i64: 2, 128>}, {pipeline_mode = #tpu.pipeline_mode<synchronous>, transform_indices = @transform_2, window_bounds = array<i64: 1, 128>}, {pipeline_mode = #tpu.pipeline_mode<synchronous>, transform_indices = @transform_3, window_bounds = array<i64: 128, 128>}, {pipeline_mode = #tpu.pipeline_mode<synchronous>, transform_indices = @transform_4, window_bounds = array<i64: 1, 128>}, {pipeline_mode = #tpu.pipeline_mode<synchronous>, transform_indices = @transform_5, window_bounds = array<i64: 128, 128>}, {pipeline_mode = #tpu.pipeline_mode<synchronous>, transform_indices = @transform_6, window_bounds = array<i64: 1, 128>}, {transform_indices = @transform_7, window_bounds = array<i64: 8, 128>}]} {
    %c0 = arith.constant 0 : index
    %c0_0 = arith.constant 0 : index
    %0 = vector.load %arg1[%c0, %c0_0] : memref<8x2xf32, #tpu.memory_space<vmem>>, vector<8x2xf32>
    %c0_1 = arith.constant 0 : index
    %c0_2 = arith.constant 0 : index
    %1 = vector.load %arg2[%c0_1, %c0_2] : memref<2x128xf32, #tpu.memory_space<vmem>>, vector<2x128xf32>
    %2 = vector.extract_strided_slice %0 {offsets = [0, 0], sizes = [8, 1], strides = [1, 1]} : vector<8x2xf32> to vector<8x1xf32>
    %3 = vector.extract_strided_slice %1 {offsets = [0, 0], sizes = [1, 128], strides = [1, 1]} : vector<2x128xf32> to vector<1x128xf32>
    %4 = vector.broadcast %2 : vector<8x1xf32> to vector<8x128xf32>
    %5 = vector.broadcast %3 : vector<1x128xf32> to vector<8x128xf32>
    %6 = arith.mulf %4, %5 : vector<8x128xf32>
    %7 = vector.extract_strided_slice %0 {offsets = [0, 1], sizes = [8, 1], strides = [1, 1]} : vector<8x2xf32> to vector<8x1xf32>
    %8 = vector.extract_strided_slice %1 {offsets = [1, 0], sizes = [1, 128], strides = [1, 1]} : vector<2x128xf32> to vector<1x128xf32>
    %9 = vector.broadcast %7 : vector<8x1xf32> to vector<8x128xf32>
    %10 = vector.broadcast %8 : vector<1x128xf32> to vector<8x128xf32>
    %11 = arith.mulf %9, %10 : vector<8x128xf32>
    %12 = arith.addf %6, %11 : vector<8x128xf32>
    %c0_3 = arith.constant 0 : index
    %c0_4 = arith.constant 0 : index
    %13 = vector.load %arg3[%c0_3, %c0_4] : memref<1x128xf32, #tpu.memory_space<vmem>>, vector<1x128xf32>
    %14 = vector.broadcast %13 : vector<1x128xf32> to vector<8x128xf32>
    %15 = arith.addf %12, %14 : vector<8x128xf32>
    %cst = arith.constant 0.000000e+00 : f32
    %16 = vector.broadcast %cst : f32 to vector<8x128xf32>
    %17 = arith.maximumf %15, %16 : vector<8x128xf32>
    %c0_5 = arith.constant 0 : index
    %c0_6 = arith.constant 0 : index
    %18 = vector.load %arg4[%c0_5, %c0_6] : memref<128x128xf32, #tpu.memory_space<vmem>>, vector<128x128xf32>
    %cst_7 = arith.constant dense<0.000000e+00> : vector<8x128xf32>
    %19 = tpu.matmul %17, %18, %cst_7 {dimension_numbers = #tpu.dot_dimension_numbers<[1], [0], [0], [1], [0, 0, 1, 1], [], []>} : vector<8x128xf32>, vector<128x128xf32>, vector<8x128xf32> -> vector<8x128xf32>
    %c0_8 = arith.constant 0 : index
    %c0_9 = arith.constant 0 : index
    %20 = vector.load %arg5[%c0_8, %c0_9] : memref<1x128xf32, #tpu.memory_space<vmem>>, vector<1x128xf32>
    %21 = vector.broadcast %20 : vector<1x128xf32> to vector<8x128xf32>
    %22 = arith.addf %19, %21 : vector<8x128xf32>
    %cst_10 = arith.constant 0.000000e+00 : f32
    %23 = vector.broadcast %cst_10 : f32 to vector<8x128xf32>
    %24 = arith.maximumf %22, %23 : vector<8x128xf32>
    %c0_11 = arith.constant 0 : index
    %c0_12 = arith.constant 0 : index
    %25 = vector.load %arg6[%c0_11, %c0_12] : memref<128x128xf32, #tpu.memory_space<vmem>>, vector<128x128xf32>
    %cst_13 = arith.constant dense<0.000000e+00> : vector<8x128xf32>
    %26 = tpu.matmul %24, %25, %cst_13 {dimension_numbers = #tpu.dot_dimension_numbers<[1], [0], [0], [1], [0, 0, 1, 1], [], []>} : vector<8x128xf32>, vector<128x128xf32>, vector<8x128xf32> -> vector<8x128xf32>
    %c0_14 = arith.constant 0 : index
    %c0_15 = arith.constant 0 : index
    %27 = vector.load %arg7[%c0_14, %c0_15] : memref<1x128xf32, #tpu.memory_space<vmem>>, vector<1x128xf32>
    %28 = vector.broadcast %27 : vector<1x128xf32> to vector<8x128xf32>
    %29 = arith.addf %26, %28 : vector<8x128xf32>
    %c0_16 = arith.constant 0 : index
    %c0_17 = arith.constant 0 : index
    %30 = vector.load %arg8[%c0_16, %c0_17] : memref<8x128xf32, #tpu.memory_space<vmem>>, vector<8x128xf32>
    tpu.vector_store %arg8[%c0_16, %c0_17], %29 {strides = array<i32>} : memref<8x128xf32, #tpu.memory_space<vmem>>, vector<8x128xf32>,
    return
  }
  func.func @transform_0(%arg0: i32) -> (i32, i32) {
    %c0_i32 = arith.constant 0 : i32
    %c0_i32_0 = arith.constant 0 : i32
    return %arg0, %c0_i32 : i32, i32
  }
  func.func @transform_1(%arg0: i32) -> (i32, i32) {
    %c0_i32 = arith.constant 0 : i32
    %c0_i32_0 = arith.constant 0 : i32
    %c0_i32_1 = arith.constant 0 : i32
    return %c0_i32, %c0_i32_0 : i32, i32
  }
  func.func @transform_2(%arg0: i32) -> (i32, i32) {
    %c0_i32 = arith.constant 0 : i32
    %c0_i32_0 = arith.constant 0 : i32
    %c0_i32_1 = arith.constant 0 : i32
    return %c0_i32, %c0_i32_0 : i32, i32
  }
  func.func @transform_3(%arg0: i32) -> (i32, i32) {
    %c0_i32 = arith.constant 0 : i32
    %c0_i32_0 = arith.constant 0 : i32
    %c0_i32_1 = arith.constant 0 : i32
    return %c0_i32, %c0_i32_0 : i32, i32
  }
  func.func @transform_4(%arg0: i32) -> (i32, i32) {
    %c0_i32 = arith.constant 0 : i32
    %c0_i32_0 = arith.constant 0 : i32
    %c0_i32_1 = arith.constant 0 : i32
    return %c0_i32, %c0_i32_0 : i32, i32
  }
  func.func @transform_5(%arg0: i32) -> (i32, i32) {
    %c0_i32 = arith.constant 0 : i32
    %c0_i32_0 = arith.constant 0 : i32
    %c0_i32_1 = arith.constant 0 : i32
    return %c0_i32, %c0_i32_0 : i32, i32
  }
  func.func @transform_6(%arg0: i32) -> (i32, i32) {
    %c0_i32 = arith.constant 0 : i32
    %c0_i32_0 = arith.constant 0 : i32
    %c0_i32_1 = arith.constant 0 : i32
    return %c0_i32, %c0_i32_0 : i32, i32
  }
  func.func @transform_7(%arg0: i32) -> (i32, i32) {
    %c0_i32 = arith.constant 0 : i32
    %c0_i32_0 = arith.constant 0 : i32
    return %arg0, %c0_i32 : i32, i32
  }
}

</mosaic_0001>

<llo_original>
// kernel: tpu_custom_call.1
$region0: #{tpu_custom_call.1}
  #allocation0 [shape = 'u32[]', space=smem, size = 0x4, offset = 0x4, fixed_abs, tag = 'smem constant byte address 0x4 - core index']
  #allocation1 [shape = 'u32[144,128]{1,0:T(1,128)}', space=vmem, size = 0x12000, scoped, tag = 'internal scratch']
  %s0 = inlined_call_operand.vmem [shape: f32[8,2], index: 0, kind: input, shape index: {}]
  %s1 = inlined_call_operand.vmem [shape: f32[2,128], index: 1, kind: input, shape index: {}]
  %s2 = inlined_call_operand.vmem [shape: f32[1,128], index: 2, kind: input, shape index: {}]
  %s3 = inlined_call_operand.hbm [shape: f32[128,128], index: 3, kind: input, shape index: {}]
  %s4 = inlined_call_operand.vmem [shape: f32[1,128], index: 4, kind: input, shape index: {}]
  %s5 = inlined_call_operand.hbm [shape: f32[128,128], index: 5, kind: input, shape index: {}]
  %s6 = inlined_call_operand.vmem [shape: f32[1,128], index: 6, kind: input, shape index: {}]
  %s7 = inlined_call_operand.hbm [shape: f32[8,128], index: 7, kind: output, shape index: {}]
  %s8 = sld [smem:[#allocation0]]
  $region46: #{tpu_custom_call.1} parent=0
    _
  %s10 = ssub.s32 1, %s8
  %s11 = scalar_select 0, %s10, %s8
  $region1: #{tpu_custom_call.1} parent=0
    #allocation2 [shape = 'u8[65536]{0}', space=vmem, size = 0x10000, scoped, tag = 'input window, operand 3, single buffered']
    #allocation3 [shape = 's32[1]{0}', space=sflag, size = 0x4, scoped, tag = 'scoped memory for tpu_custom_call.1']
    #allocation4 [shape = 's32[1]{0}', space=sflag, size = 0x4, scoped, tag = 'scoped memory for tpu_custom_call.1']
    #allocation5 [shape = 'u8[65536]{0}', space=vmem, size = 0x10000, scoped, tag = 'input window, operand 5, single buffered']
    #allocation6 [shape = 's32[1]{0}', space=sflag, size = 0x4, scoped, tag = 'scoped memory for tpu_custom_call.1']
    #allocation7 [shape = 'u8[4096]{0}', space=vmem, size = 0x1000, scoped, tag = 'output window, operand 0, single buffered']
    %12 = vsyncpa [#allocation3], 0
    %13 = vsyncpa [#allocation6], 0
    %14 = vsyncpa [#allocation4], 0
    // Predicated region
    $region2: #{tpu_custom_call.1} parent=1 // pred_check
      _
    $region3: #{tpu_custom_call.1} parent=1 // pred_check_branch
      %16 = sbr.rel (0) target = $region5
    $region4: #{tpu_custom_call.1} parent=1 // pred_region
      _
    $region5: #{tpu_custom_call.1} parent=1 // pred_fallthru
      _
    // Predicated region
    $region6: #{tpu_custom_call.1} parent=1 // pred_check
      _
    $region7: #{tpu_custom_call.1} parent=1 // pred_check_branch
      %18 = sbr.rel (0) target = $region9
    $region8: #{tpu_custom_call.1} parent=1 // pred_region
      _
    $region9: #{tpu_custom_call.1} parent=1 // pred_fallthru
      _
    // Predicated region
    $region10: #{tpu_custom_call.1} parent=1 // pred_check
      _
    $region11: #{tpu_custom_call.1} parent=1 // pred_check_branch
      %20 = sbr.rel (0) target = $region13
    $region12: #{tpu_custom_call.1} parent=1 // pred_region
      _
    $region13: #{tpu_custom_call.1} parent=1 // pred_fallthru
      _
    // Predicated region
    $region14: #{tpu_custom_call.1} parent=1 // pred_check
      _
    $region15: #{tpu_custom_call.1} parent=1 // pred_check_branch
      %22 = sbr.rel (0) target = $region17
    $region16: #{tpu_custom_call.1} parent=1 // pred_region
      %s24 = ssub.s32 2048, 2048
      %25 = vsyncadd [#allocation3], %s24
      %s26 = sshll.u32 [#allocation2], 4
      %s27 = int_to_ptr.vmem [resolvable:$true] %s26
      %32 = dma.hbm_to_vmem [thread:$0]  %s3, 2048, %s27, [#allocation3], 128, 128, 8
    $region17: #{tpu_custom_call.1} parent=1 // pred_fallthru
      _
    // Predicated region
    $region18: #{tpu_custom_call.1} parent=1 // pred_check
      _
    $region19: #{tpu_custom_call.1} parent=1 // pred_check_branch
      %34 = sbr.rel (0) target = $region21
    $region20: #{tpu_custom_call.1} parent=1 // pred_region
      _
    $region21: #{tpu_custom_call.1} parent=1 // pred_fallthru
      _
    // Predicated region
    $region22: #{tpu_custom_call.1} parent=1 // pred_check
      _
    $region23: #{tpu_custom_call.1} parent=1 // pred_check_branch
      %36 = sbr.rel (0) target = $region25
    $region24: #{tpu_custom_call.1} parent=1 // pred_region
      %s38 = ssub.s32 2048, 2048
      %39 = vsyncadd [#allocation6], %s38
      %s40 = sshll.u32 [#allocation5], 4
      %s41 = int_to_ptr.vmem [resolvable:$true] %s40
      %46 = dma.hbm_to_vmem [thread:$0]  %s5, 2048, %s41, [#allocation6], 128, 128, 8
    $region25: #{tpu_custom_call.1} parent=1 // pred_fallthru
      _
    // Predicated region
    $region26: #{tpu_custom_call.1} parent=1 // pred_check
      _
    $region27: #{tpu_custom_call.1} parent=1 // pred_check_branch
      %48 = sbr.rel (0) target = $region29
    $region28: #{tpu_custom_call.1} parent=1 // pred_region
      _
    $region29: #{tpu_custom_call.1} parent=1 // pred_fallthru
      _
    // Predicated region
    $region30: #{tpu_custom_call.1} parent=1 // pred_check
      _
    $region31: #{tpu_custom_call.1} parent=1 // pred_check_branch
      %50 = sbr.rel (0) target = $region33
    $region32: #{tpu_custom_call.1} parent=1 // pred_region
      %51 = dma.done [#allocation3], 2048
    $region33: #{tpu_custom_call.1} parent=1 // pred_fallthru
      _
    // Predicated region
    $region34: #{tpu_custom_call.1} parent=1 // pred_check
      _
    $region35: #{tpu_custom_call.1} parent=1 // pred_check_branch
      %53 = sbr.rel (0) target = $region37
    $region36: #{tpu_custom_call.1} parent=1 // pred_region
      %54 = dma.done [#allocation6], 2048
    $region37: #{tpu_custom_call.1} parent=1 // pred_fallthru
      _
    %v55 = vld [vmem:[%s0] sm:$0xff]
    %v56 = vld [vmem:[%s1] sm:$0x3]
    %58 = vset.pattern.permute.xlu0 0
    %59 = vperm.xlu0 %58, %v55
    %v60 = vpop.permute.xlu0 %59
    %v62 = vlaneseq
    %v63 = vshrl.u32 %v62, 7
    %v64 = vsub.s32 0, %v63
    %v65 = vrot.slane %v56, %v64
    %v66 = vmul.f32 %v60, %v65
    %67 = vset.pattern.permute.xlu0 1
    %68 = vperm.xlu0 %67, %v55
    %v69 = vpop.permute.xlu0 %68
    %v71 = vlaneseq
    %v72 = vshrl.u32 %v71, 7
    %v73 = vsub.s32 1, %v72
    %v74 = vrot.slane %v56, %v73
    %v75 = vmul.f32 %v69, %v74
    %v76 = vadd.f32 %v66, %v75
    %v77 = vld [vmem:[%s2] sm:$0x1]
    %v79 = vlaneseq
    %v80 = vshrl.u32 %v79, 7
    %v81 = vsub.s32 0, %v80
    %v82 = vrot.slane %v77, %v81
    %v84 = vadd.f32 %v76, %v82
    %v85 = vmax.f32 %v84, 0.0
    %v86 = vld [vmem:[#allocation2] sm:$0xff]
    %v87 = vld [vmem:[#allocation2 + $0x8] sm:$0xff]
    %v88 = vld [vmem:[#allocation2 + $0x10] sm:$0xff]
    %v89 = vld [vmem:[#allocation2 + $0x18] sm:$0xff]
    %v90 = vld [vmem:[#allocation2 + $0x20] sm:$0xff]
    %v91 = vld [vmem:[#allocation2 + $0x28] sm:$0xff]
    %v92 = vld [vmem:[#allocation2 + $0x30] sm:$0xff]
    %v93 = vld [vmem:[#allocation2 + $0x38] sm:$0xff]
    %v94 = vld [vmem:[#allocation2 + $0x40] sm:$0xff]
    %v95 = vld [vmem:[#allocation2 + $0x48] sm:$0xff]
    %v96 = vld [vmem:[#allocation2 + $0x50] sm:$0xff]
    %v97 = vld [vmem:[#allocation2 + $0x58] sm:$0xff]
    %v98 = vld [vmem:[#allocation2 + $0x60] sm:$0xff]
    %v99 = vld [vmem:[#allocation2 + $0x68] sm:$0xff]
    %v100 = vld [vmem:[#allocation2 + $0x70] sm:$0xff]
    %v101 = vld [vmem:[#allocation2 + $0x78] sm:$0xff]
    %v102 = vld [vmem:[%s4] sm:$0x1]
    %v104 = vlaneseq
    %v105 = vshrl.u32 %v104, 7
    %v106 = vsub.s32 0, %v105
    %v107 = vrot.slane %v102, %v106
    %109 = vmatprep.subr.mxu0 0.0
    %110 = vmatpush1.msra.mxu0 %v86
    %111 = vmatprep.subr.mxu0 0.0
    %112 = vmatpush1.msra.mxu0 %v87
    %113 = vmatprep.subr.mxu0 0.0
    %114 = vmatpush1.msra.mxu0 %v88
    %115 = vmatprep.subr.mxu0 0.0
    %116 = vmatpush1.msra.mxu0 %v89
    %117 = vmatprep.subr.mxu0 0.0
    %118 = vmatpush1.msra.mxu0 %v90
    %119 = vmatprep.subr.mxu0 0.0
    %120 = vmatpush1.msra.mxu0 %v91
    %121 = vmatprep.subr.mxu0 0.0
    %122 = vmatpush1.msra.mxu0 %v92
    %123 = vmatprep.subr.mxu0 0.0
    %124 = vmatpush1.msra.mxu0 %v93
    %125 = vmatprep.subr.mxu0 0.0
    %126 = vmatpush1.msra.mxu0 %v94
    %127 = vmatprep.subr.mxu0 0.0
    %128 = vmatpush1.msra.mxu0 %v95
    %129 = vmatprep.subr.mxu0 0.0
    %130 = vmatpush1.msra.mxu0 %v96
    %131 = vmatprep.subr.mxu0 0.0
    %132 = vmatpush1.msra.mxu0 %v97
    %133 = vmatprep.subr.mxu0 0.0
    %134 = vmatpush1.msra.mxu0 %v98
    %135 = vmatprep.subr.mxu0 0.0
    %136 = vmatpush1.msra.mxu0 %v99
    %137 = vmatprep.subr.mxu0 0.0
    %138 = vmatpush1.msra.mxu0 %v100
    %139 = vmatprep.subr.mxu0 0.0
    %140 = vmatpush1.msra.mxu0 %v101
    %141 = vmatprep.subr.mxu0 0.0
    %142 = vmatpush1.msra.mxu0 0.0
    %143 = vmatprep.subr.mxu0 0.0
    %144 = vmatpush1.msra.mxu0 0.0
    %145 = vmatprep.subr.mxu0 0.0
    %146 = vmatpush1.msra.mxu0 0.0
    %147 = vmatprep.subr.mxu0 0.0
    %148 = vmatpush1.msra.mxu0 0.0
    %149 = vmatprep.subr.mxu0 0.0
    %150 = vmatpush1.msra.mxu0 0.0
    %151 = vmatprep.subr.mxu0 0.0
    %152 = vmatpush1.msra.mxu0 0.0
    %153 = vmatprep.subr.mxu0 0.0
    %154 = vmatpush1.msra.mxu0 0.0
    %155 = vmatprep.subr.mxu0 0.0
    %156 = vmatpush1.msra.mxu0 0.0
    %157 = vmatprep.subr.mxu0 0.0
    %158 = vmatpush1.msra.mxu0 0.0
    %159 = vmatprep.subr.mxu0 0.0
    %160 = vmatpush1.msra.mxu0 0.0
    %161 = vmatprep.subr.mxu0 0.0
    %162 = vmatpush1.msra.mxu0 0.0
    %163 = vmatprep.subr.mxu0 0.0
    %164 = vmatpush1.msra.mxu0 0.0
    %165 = vmatprep.subr.mxu0 0.0
    %166 = vmatpush1.msra.mxu0 0.0
    %167 = vmatprep.subr.mxu0 0.0
    %168 = vmatpush1.msra.mxu0 0.0
    %169 = vmatprep.subr.mxu0 0.0
    %170 = vmatpush1.msra.mxu0 0.0
    %171 = vmatprep.subr.mxu0 0.0
    %172 = vmatpush1.msra.mxu0 0.0
    %173 = vmatprep.mubr.f32.mxu0 0.0
    %174 = vmatmul.mubr.f32.gmra.mrb[0].mxu0 %v85
    %v175 = vpop.f32.mrb[0].mxu0
    %v176 = vadd.f32 %v107, %v175
    %v177 = vpop.f32.mrb[0].mxu0
    %178 = vdwg.mxu0
    %v179 = vmax.f32 %v176, 0.0
    %v180 = vld [vmem:[#allocation5] sm:$0xff]
    %v181 = vld [vmem:[#allocation5 + $0x8] sm:$0xff]
    %v182 = vld [vmem:[#allocation5 + $0x10] sm:$0xff]
    %v183 = vld [vmem:[#allocation5 + $0x18] sm:$0xff]
    %v184 = vld [vmem:[#allocation5 + $0x20] sm:$0xff]
    %v185 = vld [vmem:[#allocation5 + $0x28] sm:$0xff]
    %v186 = vld [vmem:[#allocation5 + $0x30] sm:$0xff]
    %v187 = vld [vmem:[#allocation5 + $0x38] sm:$0xff]
    %v188 = vld [vmem:[#allocation5 + $0x40] sm:$0xff]
    %v189 = vld [vmem:[#allocation5 + $0x48] sm:$0xff]
    %v190 = vld [vmem:[#allocation5 + $0x50] sm:$0xff]
    %v191 = vld [vmem:[#allocation5 + $0x58] sm:$0xff]
    %v192 = vld [vmem:[#allocation5 + $0x60] sm:$0xff]
    %v193 = vld [vmem:[#allocation5 + $0x68] sm:$0xff]
    %v194 = vld [vmem:[#allocation5 + $0x70] sm:$0xff]
    %v195 = vld [vmem:[#allocation5 + $0x78] sm:$0xff]
    %v196 = vld [vmem:[%s6] sm:$0x1]
    %v198 = vlaneseq
    %v199 = vshrl.u32 %v198, 7
    %v200 = vsub.s32 0, %v199
    %v201 = vrot.slane %v196, %v200
    %203 = vmatprep.subr.mxu0 0.0
    %204 = vmatpush1.msra.mxu0 %v180
    %205 = vmatprep.subr.mxu0 0.0
    %206 = vmatpush1.msra.mxu0 %v181
    %207 = vmatprep.subr.mxu0 0.0
    %208 = vmatpush1.msra.mxu0 %v182
    %209 = vmatprep.subr.mxu0 0.0
    %210 = vmatpush1.msra.mxu0 %v183
    %211 = vmatprep.subr.mxu0 0.0
    %212 = vmatpush1.msra.mxu0 %v184
    %213 = vmatprep.subr.mxu0 0.0
    %214 = vmatpush1.msra.mxu0 %v185
    %215 = vmatprep.subr.mxu0 0.0
    %216 = vmatpush1.msra.mxu0 %v186
    %217 = vmatprep.subr.mxu0 0.0
    %218 = vmatpush1.msra.mxu0 %v187
    %219 = vmatprep.subr.mxu0 0.0
    %220 = vmatpush1.msra.mxu0 %v188
    %221 = vmatprep.subr.mxu0 0.0
    %222 = vmatpush1.msra.mxu0 %v189
    %223 = vmatprep.subr.mxu0 0.0
    %224 = vmatpush1.msra.mxu0 %v190
    %225 = vmatprep.subr.mxu0 0.0
    %226 = vmatpush1.msra.mxu0 %v191
    %227 = vmatprep.subr.mxu0 0.0
    %228 = vmatpush1.msra.mxu0 %v192
    %229 = vmatprep.subr.mxu0 0.0
    %230 = vmatpush1.msra.mxu0 %v193
    %231 = vmatprep.subr.mxu0 0.0
    %232 = vmatpush1.msra.mxu0 %v194
    %233 = vmatprep.subr.mxu0 0.0
    %234 = vmatpush1.msra.mxu0 %v195
    %235 = vmatprep.subr.mxu0 0.0
    %236 = vmatpush1.msra.mxu0 0.0
    %237 = vmatprep.subr.mxu0 0.0
    %238 = vmatpush1.msra.mxu0 0.0
    %239 = vmatprep.subr.mxu0 0.0
    %240 = vmatpush1.msra.mxu0 0.0
    %241 = vmatprep.subr.mxu0 0.0
    %242 = vmatpush1.msra.mxu0 0.0
    %243 = vmatprep.subr.mxu0 0.0
    %244 = vmatpush1.msra.mxu0 0.0
    %245 = vmatprep.subr.mxu0 0.0
    %246 = vmatpush1.msra.mxu0 0.0
    %247 = vmatprep.subr.mxu0 0.0
    %248 = vmatpush1.msra.mxu0 0.0
    %249 = vmatprep.subr.mxu0 0.0
    %250 = vmatpush1.msra.mxu0 0.0
    %251 = vmatprep.subr.mxu0 0.0
    %252 = vmatpush1.msra.mxu0 0.0
    %253 = vmatprep.subr.mxu0 0.0
    %254 = vmatpush1.msra.mxu0 0.0
    %255 = vmatprep.subr.mxu0 0.0
    %256 = vmatpush1.msra.mxu0 0.0
    %257 = vmatprep.subr.mxu0 0.0
    %258 = vmatpush1.msra.mxu0 0.0
    %259 = vmatprep.subr.mxu0 0.0
    %260 = vmatpush1.msra.mxu0 0.0
    %261 = vmatprep.subr.mxu0 0.0
    %262 = vmatpush1.msra.mxu0 0.0
    %263 = vmatprep.subr.mxu0 0.0
    %264 = vmatpush1.msra.mxu0 0.0
    %265 = vmatprep.subr.mxu0 0.0
    %266 = vmatpush1.msra.mxu0 0.0
    %267 = vmatprep.mubr.f32.mxu0 0.0
    %268 = vmatmul.mubr.f32.gmra.mrb[0].mxu0 %v179
    %v269 = vpop.f32.mrb[0].mxu0
    %v270 = vadd.f32 %v201, %v269
    %v271 = vpop.f32.mrb[0].mxu0
    %272 = vdwg.mxu0
    %273 = vst [vmem:[#allocation7] sm:$0xff] %v270
    // Predicated region
    $region38: #{tpu_custom_call.1} parent=1 // pred_check
      _
    $region39: #{tpu_custom_call.1} parent=1 // pred_check_branch
      %275 = sbr.rel (0) target = $region41
    $region40: #{tpu_custom_call.1} parent=1 // pred_region
      %s277 = ssub.s32 128, 128
      %278 = vsyncadd [#allocation4], %s277
      %s280 = sshll.u32 [#allocation7], 4
      %s281 = int_to_ptr.vmem [resolvable:$true] %s280
      %283 = dma.vmem_to_hbm [thread:$0]  %s281, 128, %s7, [#allocation4]
    $region41: #{tpu_custom_call.1} parent=1 // pred_fallthru
      _
    // Predicated region
    $region42: #{tpu_custom_call.1} parent=1 // pred_check
      _
    $region43: #{tpu_custom_call.1} parent=1 // pred_check_branch
      %285 = sbr.rel (0) target = $region45
    $region44: #{tpu_custom_call.1} parent=1 // pred_region
      %286 = dma.done [#allocation4], 128
    $region45: #{tpu_custom_call.1} parent=1 // pred_fallthru
      _
    %287 = vsyncpa [#allocation3], 1
    %288 = vsyncpa [#allocation6], 1
    %289 = vsyncpa [#allocation4], 1

</llo_original>
